<compile_context>
chip_gen: v6e
topology: v6e:2x2x1
jax: 0.10.0
libtpu: 0.0.40
codegen_flags: <defaults>
</compile_context>

<pallas_src>
import jax
import jax.numpy as jnp
from jax.experimental import pallas as pl
from jax.experimental.pallas import tpu as pltpu

_LANES = 128
_TARGET_BLOCK_BYTES = 8 * 1024 * 1024    # 8 MiB/block; x2 buffers x (in+out) = 32 MiB VMEM
_VMEM_LIMIT_BYTES = 40 * 1024 * 1024     # headroom over 32 MiB; under v7x's 64 MiB physical


def _hswish_kernel(x_ref, o_ref):
    x = x_ref[...]
    xf = x.astype(jnp.float32)
    # hard-swish: x * relu6(x + 3) / 6  ==  x * clamp(x + 3, 0, 6) * (1/6)
    hsig = jnp.clip(xf + 3.0, 0.0, 6.0) * (1.0 / 6.0)
    o_ref[...] = (xf * hsig).astype(o_ref.dtype)


def _hswish_jnp(x: jax.Array) -> jax.Array:
    """Tiny tail / fallback path (plain jnp, same math, f32 internals)."""
    xf = x.astype(jnp.float32)
    return (xf * (jnp.clip(xf + 3.0, 0.0, 6.0) * (1.0 / 6.0))).astype(x.dtype)


def _pick_tile_rows(rows: int, itemsize: int) -> int:
    """Row tile (32-sublane granularity: legal for f32/bf16 (8,128)/(16,128) tilings)."""
    target = max(32, (_TARGET_BLOCK_BYTES // (_LANES * itemsize)) // 32 * 32)
    if rows <= 64:
        return rows                       # single block; nothing worth pipelining
    if rows <= target:
        # Whole array smaller than one target block: aim for ~4 grid steps so
        # writeback of block i overlaps the fetch of block i+1 (and v7x's two
        # TensorCores have >=2 blocks each).
        t = -(-rows // 4)
        return min(rows, -(-t // 32) * 32)
    return target


def _run_2d(x2d: jax.Array, tile_rows: int, donate: bool) -> jax.Array:
    rows, lanes = x2d.shape
    tile_rows = min(tile_rows, rows)
    # tile_rows is either == rows (block equals full dims -> always legal) or a
    # multiple of 32 (satisfies the (8,128) rule); pl.cdiv grid handles a
    # partial last block (OOB writes are masked/dropped).
    block = (tile_rows, lanes)
    grid = (pl.cdiv(rows, tile_rows),)

    return pl.pallas_call(
        _hswish_kernel,
        out_shape=jax.ShapeDtypeStruct((rows, lanes), x2d.dtype),
        grid_spec=pltpu.PrefetchScalarGridSpec(
            num_scalar_prefetch=0,
            grid=grid,
            in_specs=[pl.BlockSpec(block, lambda i: (i, 0))],
            out_specs=pl.BlockSpec(block, lambda i: (i, 0)),
        ),
        input_output_aliases=({0: 0} if donate else {}),
        compiler_params=pltpu.CompilerParams(
            # "parallel" lets megacore chips shard the grid loop across TCs.
            dimension_semantics=("parallel",),
            vmem_limit_bytes=_VMEM_LIMIT_BYTES,
        ),
    )(x2d)


def hswish(x: jax.Array, *, donate_input: bool = False) -> jax.Array:
    """Hard swish applied elementwise; preserves shape and dtype.

    donate_input=True aliases the output onto the input HBM buffer
    (input_output_aliases={0:0}); only enable it when the caller donates x,
    otherwise XLA inserts a defensive copy.
    """
    if not jnp.issubdtype(x.dtype, jnp.floating):
        # TODO(synk): quantized int8 scale/zero-point requantization not implemented.
        raise TypeError(f"hswish: only float dtypes supported, got {x.dtype}")

    orig_shape = x.shape
    n = x.size
    if n == 0:
        return x
    itemsize = jnp.dtype(x.dtype).itemsize

    if n % _LANES == 0:
        # Fast path: pure metadata reshape to a lane-dense (rows, 128) slab.
        rows = n // _LANES
        out2d = _run_2d(x.reshape(rows, _LANES), _pick_tile_rows(rows, itemsize),
                        donate_input)
        return out2d.reshape(orig_shape)

    # Ragged path: kernel on the 128-aligned prefix (metadata reshape + slice),
    # tiny (<128 element) tail with plain jnp, single concatenate at the end.
    n_main = (n // _LANES) * _LANES
    x_flat = x.reshape(-1)
    if n_main == 0:
        return _hswish_jnp(x_flat).reshape(orig_shape)
    rows = n_main // _LANES
    main = _run_2d(x_flat[:n_main].reshape(rows, _LANES),
                   _pick_tile_rows(rows, itemsize), False)
    tail = _hswish_jnp(x_flat[n_main:])
    return jnp.concatenate([main.reshape(-1), tail]).reshape(orig_shape)


def _ref_hswish(x):
    xf = x.astype(jnp.float32)
    return xf * (jnp.clip(xf + 3.0, 0.0, 6.0) / 6.0)


if __name__ == "__main__":
    key = jax.random.PRNGKey(0)

    # Primary test: NCHW input consistent with the PyTorch module (single block).
    x = jax.random.normal(key, (2, 4, 16, 16), dtype=jnp.float32) * 4.0
    y = jax.block_until_ready(hswish(x))
    assert y.shape == x.shape and y.dtype == x.dtype
    assert jnp.allclose(y, _ref_hswish(x), atol=1e-6), "mismatch (fast path)"

    # Multi-block path with a partial last block (rows=280, tile=96, grid=3).
    x2 = jax.random.normal(jax.random.PRNGKey(1), (2, 8, 40, 56), dtype=jnp.float32) * 3.0
    y2 = jax.block_until_ready(hswish(x2))
    assert jnp.allclose(y2, _ref_hswish(x2), atol=1e-6), "mismatch (multi-block)"

    # Donated-input path (input_output_aliases={0:0}).
    y1d = jax.block_until_ready(hswish(x2, donate_input=True))
    assert jnp.allclose(y1d, _ref_hswish(x2), atol=1e-6), "mismatch (donated)"

    # bf16 path (f32 internal compute, cast on store).
    xb = (jax.random.normal(jax.random.PRNGKey(3), (2, 4, 16, 16)) * 4.0).astype(jnp.bfloat16)
    yb = jax.block_until_ready(hswish(xb))
    assert yb.dtype == jnp.bfloat16
    assert jnp.allclose(yb.astype(jnp.float32), _ref_hswish(xb), atol=2e-2), "mismatch (bf16)"

    # Ragged: prefix (128 elems) through the kernel + 7-element jnp tail.
    x3 = jax.random.normal(jax.random.PRNGKey(2), (3, 5, 9), dtype=jnp.float32) * 5.0
    y3 = jax.block_until_ready(hswish(x3))
    assert jnp.allclose(y3, _ref_hswish(x3), atol=1e-6), "mismatch (ragged prefix+tail)"

    # Ragged, smaller than one lane row (pure jnp micro path).
    x4 = jax.random.normal(jax.random.PRNGKey(4), (3, 5, 7), dtype=jnp.float32) * 5.0
    y4 = jax.block_until_ready(hswish(x4))
    assert jnp.allclose(y4, _ref_hswish(x4), atol=1e-6), "mismatch (ragged tiny)"

    print("KERNEL_OK")
</pallas_src>

<mosaic_0001>
module attributes {stable_mosaic.version = 11 : i64} {
  func.func @_hswish_kernel(%arg0: i32, %arg1: memref<16x128xf32, #tpu.memory_space<vmem>>, %arg2: memref<16x128xf32, #tpu.memory_space<vmem>>) attributes {dimension_semantics = [#tpu.dimension_semantics<parallel>], iteration_bounds = array<i64: 1>, scalar_prefetch = 0 : i64, scratch_operands = 0 : i64, tpu.core_type = #tpu.core_type<tc>, window_params = [{transform_indices = @transform_0, window_bounds = array<i64: 16, 128>}, {transform_indices = @transform_1, window_bounds = array<i64: 16, 128>}]} {
    %c0 = arith.constant 0 : index
    %c0_0 = arith.constant 0 : index
    %0 = vector.load %arg1[%c0, %c0_0] : memref<16x128xf32, #tpu.memory_space<vmem>>, vector<16x128xf32>
    %cst = arith.constant 3.000000e+00 : f32
    %1 = vector.broadcast %cst : f32 to vector<16x128xf32>
    %2 = arith.addf %0, %1 : vector<16x128xf32>
    %cst_1 = arith.constant 0.000000e+00 : f32
    %cst_2 = arith.constant 6.000000e+00 : f32
    %3 = vector.broadcast %cst_1 : f32 to vector<16x128xf32>
    %4 = arith.maximumf %3, %2 : vector<16x128xf32>
    %5 = vector.broadcast %cst_2 : f32 to vector<16x128xf32>
    %6 = arith.minimumf %5, %4 : vector<16x128xf32>
    %cst_3 = arith.constant 0.166666672 : f32
    %7 = vector.broadcast %cst_3 : f32 to vector<16x128xf32>
    %8 = arith.mulf %6, %7 : vector<16x128xf32>
    %9 = arith.mulf %0, %8 : vector<16x128xf32>
    %c0_4 = arith.constant 0 : index
    %c0_5 = arith.constant 0 : index
    %10 = vector.load %arg2[%c0_4, %c0_5] : memref<16x128xf32, #tpu.memory_space<vmem>>, vector<16x128xf32>
    tpu.vector_store %arg2[%c0_4, %c0_5], %9 {strides = array<i32>} : memref<16x128xf32, #tpu.memory_space<vmem>>, vector<16x128xf32>,
    return
  }
  func.func @transform_0(%arg0: i32) -> (i32, i32) {
    %c0_i32 = arith.constant 0 : i32
    %c0_i32_0 = arith.constant 0 : i32
    return %arg0, %c0_i32 : i32, i32
  }
  func.func @transform_1(%arg0: i32) -> (i32, i32) {
    %c0_i32 = arith.constant 0 : i32
    %c0_i32_0 = arith.constant 0 : i32
    return %arg0, %c0_i32 : i32, i32
  }
}

</mosaic_0001>

<llo_original>
// kernel: tpu_custom_call.1
$region0: #{tpu_custom_call.1}
  #allocation0 [shape = 'u32[]', space=smem, size = 0x4, offset = 0x4, fixed_abs, tag = 'smem constant byte address 0x4 - core index']
  #allocation1 [shape = 'u32[144,128]{1,0:T(1,128)}', space=vmem, size = 0x12000, scoped, tag = 'internal scratch']
  %s0 = inlined_call_operand.hbm [shape: f32[16,128], index: 0, kind: input, shape index: {}]
  %s1 = inlined_call_operand.hbm [shape: f32[16,128], index: 1, kind: output, shape index: {}]
  %s2 = sld [smem:[#allocation0]]
  $region18: #{tpu_custom_call.1} parent=0
    _
  %s4 = ssub.s32 1, %s2
  %s5 = scalar_select 0, %s4, %s2
  $region1: #{tpu_custom_call.1} parent=0
    #allocation2 [shape = 'u8[8192]{0}', space=vmem, size = 0x2000, scoped, tag = 'input window, operand 0, single buffered']
    #allocation3 [shape = 's32[1]{0}', space=sflag, size = 0x4, scoped, tag = 'scoped memory for tpu_custom_call.1']
    #allocation4 [shape = 's32[1]{0}', space=sflag, size = 0x4, scoped, tag = 'scoped memory for tpu_custom_call.1']
    #allocation5 [shape = 'u8[8192]{0}', space=vmem, size = 0x2000, scoped, tag = 'output window, operand 0, single buffered']
    %6 = vsyncpa [#allocation3], 0
    %7 = vsyncpa [#allocation4], 0
    // Predicated region
    $region2: #{tpu_custom_call.1} parent=1 // pred_check
      _
    $region3: #{tpu_custom_call.1} parent=1 // pred_check_branch
      %9 = sbr.rel (0) target = $region5
    $region4: #{tpu_custom_call.1} parent=1 // pred_region
      %s11 = ssub.s32 256, 256
      %12 = vsyncadd [#allocation3], %s11
      %s13 = sshll.u32 [#allocation2], 4
      %s14 = int_to_ptr.vmem [resolvable:$true] %s13
      %19 = dma.hbm_to_vmem [thread:$0]  %s0, 256, %s14, [#allocation3], 128, 128, 8
    $region5: #{tpu_custom_call.1} parent=1 // pred_fallthru
      _
    // Predicated region
    $region6: #{tpu_custom_call.1} parent=1 // pred_check
      _
    $region7: #{tpu_custom_call.1} parent=1 // pred_check_branch
      %21 = sbr.rel (0) target = $region9
    $region8: #{tpu_custom_call.1} parent=1 // pred_region
      %22 = dma.done [#allocation3], 256
    $region9: #{tpu_custom_call.1} parent=1 // pred_fallthru
      _
    %v23 = vld [vmem:[#allocation2] sm:$0xff]
    %v24 = vld [vmem:[#allocation2 + $0x8] sm:$0xff]
    %v25 = vadd.f32 %v23, 3.0
    %v26 = vadd.f32 %v24, 3.0
    %v27 = vmax.f32 %v25, 0.0
    %v28 = vmax.f32 %v26, 0.0
    %v29 = vmin.f32 %v27, 6.0
    %v30 = vmin.f32 %v28, 6.0
    %v31 = vmul.f32 %v29, 0.16666667
    %v32 = vmul.f32 %v30, 0.16666667
    %v33 = vmul.f32 %v23, %v31
    %v34 = vmul.f32 %v24, %v32
    %35 = vst [vmem:[#allocation5] sm:$0xff] %v33
    %36 = vst [vmem:[#allocation5 + $0x8] sm:$0xff] %v34
    // Predicated region
    $region10: #{tpu_custom_call.1} parent=1 // pred_check
      _
    $region11: #{tpu_custom_call.1} parent=1 // pred_check_branch
      %38 = sbr.rel (0) target = $region13
    $region12: #{tpu_custom_call.1} parent=1 // pred_region
      %s40 = ssub.s32 256, 256
      %41 = vsyncadd [#allocation4], %s40
      %s42 = sshll.u32 [#allocation5], 4
      %s43 = int_to_ptr.vmem [resolvable:$true] %s42
      %48 = dma.vmem_to_hbm [thread:$0]  %s43, 256, %s1, [#allocation4], 128, 128, 8
    $region13: #{tpu_custom_call.1} parent=1 // pred_fallthru
      _
    // Predicated region
    $region14: #{tpu_custom_call.1} parent=1 // pred_check
      _
    $region15: #{tpu_custom_call.1} parent=1 // pred_check_branch
      %50 = sbr.rel (0) target = $region17
    $region16: #{tpu_custom_call.1} parent=1 // pred_region
      %51 = dma.done [#allocation4], 256
    $region17: #{tpu_custom_call.1} parent=1 // pred_fallthru
      _
    %52 = vsyncpa [#allocation3], 1
    %53 = vsyncpa [#allocation4], 1

</llo_original>
